<compile_context>
chip_gen: v6e
topology: v6e:2x2x1
jax: 0.10.0
libtpu: 0.0.40
codegen_flags: <defaults>
</compile_context>

<pallas_src>
from functools import partial

import jax
import jax.numpy as jnp
from jax.experimental import pallas as pl
from jax.experimental.pallas import tpu as pltpu

DIM_FEATURES = 10
H0, H1 = 25, 15  # hidden widths of the two intermediate Linear layers


def _round_up(v, m):
    return ((v + m - 1) // m) * m


def _sigmoid(z):
    # exp on the EUP, approx reciprocal on the EUP -> VALU slot stays free.
    e = jnp.exp(-z)
    return pl.reciprocal(1.0 + e, approx=True)


def encoder2_kernel(x_ref, w0_ref, b0_ref, w1_ref, b1_ref, w2_ref, b2_ref, o_ref):
    """Fused 3-layer MLP forward in (features, batch) layout.

    x_ref : (1, tn)            batch tile on lanes
    w0    : (25, 1)   b0: (25, 1)
    w1    : (15, 25)  b1: (15, 1)
    w2    : (10, 15)  b2: (10, 1)
    o_ref : (10, tn)
    """
    x = x_ref[...]                                            # (1, tn)

    # Layer 0: in_features == 1, so W0 @ X is an outer product -> VPU
    # broadcast multiply instead of pushing a K=1 matmul through the MXU.
    h = _sigmoid(w0_ref[...] * x + b0_ref[...])               # (25, tn)

    # Layer 1: (15, 25) @ (25, tn) on the MXU, batch fills the N side.
    h = _sigmoid(
        jnp.dot(w1_ref[...], h, preferred_element_type=jnp.float32) + b1_ref[...]
    )                                                         # (15, tn)

    # Layer 2: (10, 15) @ (15, tn).
    o_ref[...] = _sigmoid(
        jnp.dot(w2_ref[...], h, preferred_element_type=jnp.float32) + b2_ref[...]
    )                                                         # (10, tn)


@partial(jax.jit, static_argnames=("tn",))
def encoder2_forward(x, params, *, tn=2048):
    """x: (N, 1) float32.  params: w{0,1,2} (out,in) and b{0,1,2} (out,1).

    Returns (N, DIM_FEATURES) float32, matching PyTorch Encoder2.forward.
    """
    n = x.shape[0]

    # Lane tile: multiple of 128, capped so tiny batches don't over-pad.
    tn = max(128, _round_up(tn, 128))
    tn = min(tn, _round_up(max(n, 1), 128))
    n_pad = _round_up(n, tn)

    # Layout plumbing in the wrapper (fused by jit): batch onto the lane axis.
    # TODO(synk): for very large N the pad/slice copies could be avoided with a
    # masked final-tile store (pltpu.store + scalar-prefetched n); kept simple here.
    x_t = jnp.pad(x.astype(jnp.float32).T, ((0, 0), (0, n_pad - n)))   # (1, n_pad)

    w0, b0 = params["w0"], params["b0"]
    w1, b1 = params["w1"], params["b1"]
    w2, b2 = params["w2"], params["b2"]

    grid = (n_pad // tn,)

    out_t = pl.pallas_call(
        encoder2_kernel,
        out_shape=jax.ShapeDtypeStruct((DIM_FEATURES, n_pad), jnp.float32),
        grid_spec=pltpu.PrefetchScalarGridSpec(
            num_scalar_prefetch=0,
            grid=grid,
            in_specs=[
                pl.BlockSpec((1, tn), lambda i: (0, i)),               # x tile
                pl.BlockSpec((H0, 1), lambda i: (0, 0)),               # w0
                pl.BlockSpec((H0, 1), lambda i: (0, 0)),               # b0
                pl.BlockSpec((H1, H0), lambda i: (0, 0)),              # w1
                pl.BlockSpec((H1, 1), lambda i: (0, 0)),               # b1
                pl.BlockSpec((DIM_FEATURES, H1), lambda i: (0, 0)),    # w2
                pl.BlockSpec((DIM_FEATURES, 1), lambda i: (0, 0)),     # b2
            ],
            out_specs=pl.BlockSpec((DIM_FEATURES, tn), lambda i: (0, i)),
        ),
        compiler_params=pltpu.CompilerParams(
            dimension_semantics=("parallel",),   # independent batch tiles
        ),
    )(x_t, w0, b0, w1, b1, w2, b2)

    return out_t[:, :n].T                                      # (N, DIM_FEATURES)


def init_params(key):
    """Deterministic init matching torch.nn.Linear default:
    U(-1/sqrt(fan_in), 1/sqrt(fan_in)) for both weight and bias.
    Weights in PyTorch (out, in) layout; biases as (out, 1) columns."""
    ks = jax.random.split(key, 6)

    def lin(kw, kb, fan_in, fan_out):
        bound = 1.0 / jnp.sqrt(jnp.float32(fan_in))
        w = jax.random.uniform(kw, (fan_out, fan_in), jnp.float32, -bound, bound)
        b = jax.random.uniform(kb, (fan_out, 1), jnp.float32, -bound, bound)
        return w, b

    w0, b0 = lin(ks[0], ks[1], 1, H0)
    w1, b1 = lin(ks[2], ks[3], H0, H1)
    w2, b2 = lin(ks[4], ks[5], H1, DIM_FEATURES)
    return dict(w0=w0, b0=b0, w1=w1, b1=b1, w2=w2, b2=b2)


def reference_forward(x, params):
    """Pure-JAX reference, batch-major, exact sigmoid (matches PyTorch)."""
    h = jax.nn.sigmoid(x @ params["w0"].T + params["b0"].T)
    h = jax.nn.sigmoid(h @ params["w1"].T + params["b1"].T)
    return jax.nn.sigmoid(h @ params["w2"].T + params["b2"].T)


if __name__ == "__main__":
    key = jax.random.PRNGKey(0)
    k_x, k_p, k_x2 = jax.random.split(key, 3)

    params = init_params(k_p)

    # --- Small batch of scalar samples (as in the reference script) ---------
    N = 16
    x = jax.random.normal(k_x, (N, 1), jnp.float32)
    idx = jnp.argsort(x.squeeze())          # preprocessing from the spec
    x = x[idx]

    y = jax.block_until_ready(encoder2_forward(x, params))
    y_ref = reference_forward(x, params)
    assert y.shape == (N, DIM_FEATURES)
    # approx=True reciprocal has ~2^-12 relative error -> tolerance loosened.
    assert jnp.allclose(y, y_ref, atol=2e-3, rtol=2e-3), "mismatch vs reference (N=16)"

    # --- Ragged batch that exercises a multi-step grid ----------------------
    N2 = 300
    x2 = jax.random.normal(k_x2, (N2, 1), jnp.float32)
    y2 = jax.block_until_ready(encoder2_forward(x2, params, tn=128))
    y2_ref = reference_forward(x2, params)
    assert y2.shape == (N2, DIM_FEATURES)
    assert jnp.allclose(y2, y2_ref, atol=2e-3, rtol=2e-3), "mismatch vs reference (N=300)"

    print("KERNEL_OK")
</pallas_src>

<mosaic_0001>
module attributes {stable_mosaic.version = 11 : i64} {
  func.func @encoder2_kernel(%arg0: i32, %arg1: memref<1x128xf32, #tpu.memory_space<vmem>>, %arg2: memref<25x1xf32, #tpu.memory_space<vmem>>, %arg3: memref<25x1xf32, #tpu.memory_space<vmem>>, %arg4: memref<15x25xf32, #tpu.memory_space<vmem>>, %arg5: memref<15x1xf32, #tpu.memory_space<vmem>>, %arg6: memref<10x15xf32, #tpu.memory_space<vmem>>, %arg7: memref<10x1xf32, #tpu.memory_space<vmem>>, %arg8: memref<10x128xf32, #tpu.memory_space<vmem>>) attributes {dimension_semantics = [#tpu.dimension_semantics<parallel>], iteration_bounds = array<i64: 1>, scalar_prefetch = 0 : i64, scratch_operands = 0 : i64, tpu.core_type = #tpu.core_type<tc>, window_params = [{transform_indices = @transform_0, window_bounds = array<i64: 1, 128>}, {pipeline_mode = #tpu.pipeline_mode<synchronous>, transform_indices = @transform_1, window_bounds = array<i64: 25, 1>}, {pipeline_mode = #tpu.pipeline_mode<synchronous>, transform_indices = @transform_2, window_bounds = array<i64: 25, 1>}, {pipeline_mode = #tpu.pipeline_mode<synchronous>, transform_indices = @transform_3, window_bounds = array<i64: 15, 25>}, {pipeline_mode = #tpu.pipeline_mode<synchronous>, transform_indices = @transform_4, window_bounds = array<i64: 15, 1>}, {pipeline_mode = #tpu.pipeline_mode<synchronous>, transform_indices = @transform_5, window_bounds = array<i64: 10, 15>}, {pipeline_mode = #tpu.pipeline_mode<synchronous>, transform_indices = @transform_6, window_bounds = array<i64: 10, 1>}, {transform_indices = @transform_7, window_bounds = array<i64: 10, 128>}]} {
    %c0 = arith.constant 0 : index
    %c0_0 = arith.constant 0 : index
    %0 = vector.load %arg1[%c0, %c0_0] : memref<1x128xf32, #tpu.memory_space<vmem>>, vector<1x128xf32>
    %c0_1 = arith.constant 0 : index
    %c0_2 = arith.constant 0 : index
    %1 = vector.load %arg2[%c0_1, %c0_2] : memref<25x1xf32, #tpu.memory_space<vmem>>, vector<25x1xf32>
    %2 = vector.broadcast %1 : vector<25x1xf32> to vector<25x128xf32>
    %3 = vector.broadcast %0 : vector<1x128xf32> to vector<25x128xf32>
    %4 = arith.mulf %2, %3 : vector<25x128xf32>
    %c0_3 = arith.constant 0 : index
    %c0_4 = arith.constant 0 : index
    %5 = vector.load %arg3[%c0_3, %c0_4] : memref<25x1xf32, #tpu.memory_space<vmem>>, vector<25x1xf32>
    %6 = vector.broadcast %5 : vector<25x1xf32> to vector<25x128xf32>
    %7 = arith.addf %4, %6 : vector<25x128xf32>
    %cst = arith.constant 0.000000e+00 : f32
    %8 = vector.broadcast %cst : f32 to vector<25x128xf32>
    %9 = arith.subf %8, %7 : vector<25x128xf32>
    %10 = math.exp %9 : vector<25x128xf32>
    %cst_5 = arith.constant 1.000000e+00 : f32
    %11 = vector.broadcast %cst_5 : f32 to vector<25x128xf32>
    %12 = arith.addf %11, %10 : vector<25x128xf32>
    %13 = tpu.reciprocal %12 {approx = true} : vector<25x128xf32> -> vector<25x128xf32>
    %c0_6 = arith.constant 0 : index
    %c0_7 = arith.constant 0 : index
    %14 = vector.load %arg4[%c0_6, %c0_7] : memref<15x25xf32, #tpu.memory_space<vmem>>, vector<15x25xf32>
    %cst_8 = arith.constant dense<0.000000e+00> : vector<15x128xf32>
    %15 = tpu.matmul %14, %13, %cst_8 {dimension_numbers = #tpu.dot_dimension_numbers<[1], [0], [0], [1], [0, 0, 1, 1], [], []>} : vector<15x25xf32>, vector<25x128xf32>, vector<15x128xf32> -> vector<15x128xf32>
    %c0_9 = arith.constant 0 : index
    %c0_10 = arith.constant 0 : index
    %16 = vector.load %arg5[%c0_9, %c0_10] : memref<15x1xf32, #tpu.memory_space<vmem>>, vector<15x1xf32>
    %17 = vector.broadcast %16 : vector<15x1xf32> to vector<15x128xf32>
    %18 = arith.addf %15, %17 : vector<15x128xf32>
    %cst_11 = arith.constant 0.000000e+00 : f32
    %19 = vector.broadcast %cst_11 : f32 to vector<15x128xf32>
    %20 = arith.subf %19, %18 : vector<15x128xf32>
    %21 = math.exp %20 : vector<15x128xf32>
    %cst_12 = arith.constant 1.000000e+00 : f32
    %22 = vector.broadcast %cst_12 : f32 to vector<15x128xf32>
    %23 = arith.addf %22, %21 : vector<15x128xf32>
    %24 = tpu.reciprocal %23 {approx = true} : vector<15x128xf32> -> vector<15x128xf32>
    %c0_13 = arith.constant 0 : index
    %c0_14 = arith.constant 0 : index
    %25 = vector.load %arg6[%c0_13, %c0_14] : memref<10x15xf32, #tpu.memory_space<vmem>>, vector<10x15xf32>
    %cst_15 = arith.constant dense<0.000000e+00> : vector<10x128xf32>
    %26 = tpu.matmul %25, %24, %cst_15 {dimension_numbers = #tpu.dot_dimension_numbers<[1], [0], [0], [1], [0, 0, 1, 1], [], []>} : vector<10x15xf32>, vector<15x128xf32>, vector<10x128xf32> -> vector<10x128xf32>
    %c0_16 = arith.constant 0 : index
    %c0_17 = arith.constant 0 : index
    %27 = vector.load %arg7[%c0_16, %c0_17] : memref<10x1xf32, #tpu.memory_space<vmem>>, vector<10x1xf32>
    %28 = vector.broadcast %27 : vector<10x1xf32> to vector<10x128xf32>
    %29 = arith.addf %26, %28 : vector<10x128xf32>
    %cst_18 = arith.constant 0.000000e+00 : f32
    %30 = vector.broadcast %cst_18 : f32 to vector<10x128xf32>
    %31 = arith.subf %30, %29 : vector<10x128xf32>
    %32 = math.exp %31 : vector<10x128xf32>
    %cst_19 = arith.constant 1.000000e+00 : f32
    %33 = vector.broadcast %cst_19 : f32 to vector<10x128xf32>
    %34 = arith.addf %33, %32 : vector<10x128xf32>
    %35 = tpu.reciprocal %34 {approx = true} : vector<10x128xf32> -> vector<10x128xf32>
    %c0_20 = arith.constant 0 : index
    %c0_21 = arith.constant 0 : index
    %36 = vector.load %arg8[%c0_20, %c0_21] : memref<10x128xf32, #tpu.memory_space<vmem>>, vector<10x128xf32>
    tpu.vector_store %arg8[%c0_20, %c0_21], %35 {strides = array<i32>} : memref<10x128xf32, #tpu.memory_space<vmem>>, vector<10x128xf32>,
    return
  }
  func.func @transform_0(%arg0: i32) -> (i32, i32) {
    %c0_i32 = arith.constant 0 : i32
    %c0_i32_0 = arith.constant 0 : i32
    return %c0_i32, %arg0 : i32, i32
  }
  func.func @transform_1(%arg0: i32) -> (i32, i32) {
    %c0_i32 = arith.constant 0 : i32
    %c0_i32_0 = arith.constant 0 : i32
    %c0_i32_1 = arith.constant 0 : i32
    return %c0_i32, %c0_i32_0 : i32, i32
  }
  func.func @transform_2(%arg0: i32) -> (i32, i32) {
    %c0_i32 = arith.constant 0 : i32
    %c0_i32_0 = arith.constant 0 : i32
    %c0_i32_1 = arith.constant 0 : i32
    return %c0_i32, %c0_i32_0 : i32, i32
  }
  func.func @transform_3(%arg0: i32) -> (i32, i32) {
    %c0_i32 = arith.constant 0 : i32
    %c0_i32_0 = arith.constant 0 : i32
    %c0_i32_1 = arith.constant 0 : i32
    return %c0_i32, %c0_i32_0 : i32, i32
  }
  func.func @transform_4(%arg0: i32) -> (i32, i32) {
    %c0_i32 = arith.constant 0 : i32
    %c0_i32_0 = arith.constant 0 : i32
    %c0_i32_1 = arith.constant 0 : i32
    return %c0_i32, %c0_i32_0 : i32, i32
  }
  func.func @transform_5(%arg0: i32) -> (i32, i32) {
    %c0_i32 = arith.constant 0 : i32
    %c0_i32_0 = arith.constant 0 : i32
    %c0_i32_1 = arith.constant 0 : i32
    return %c0_i32, %c0_i32_0 : i32, i32
  }
  func.func @transform_6(%arg0: i32) -> (i32, i32) {
    %c0_i32 = arith.constant 0 : i32
    %c0_i32_0 = arith.constant 0 : i32
    %c0_i32_1 = arith.constant 0 : i32
    return %c0_i32, %c0_i32_0 : i32, i32
  }
  func.func @transform_7(%arg0: i32) -> (i32, i32) {
    %c0_i32 = arith.constant 0 : i32
    %c0_i32_0 = arith.constant 0 : i32
    return %c0_i32, %arg0 : i32, i32
  }
}

</mosaic_0001>

<llo_original>
// kernel: encoder2_forward.1
$region0: #{encoder2_forward.1}
  #allocation0 [shape = 'u32[]', space=smem, size = 0x4, offset = 0x4, fixed_abs, tag = 'smem constant byte address 0x4 - core index']
  #allocation1 [shape = 'u32[144,128]{1,0:T(1,128)}', space=vmem, size = 0x12000, scoped, tag = 'internal scratch']
  %s0 = inlined_call_operand.vmem [shape: f32[1,128], index: 0, kind: input, shape index: {}]
  %s1 = inlined_call_operand.vmem [shape: f32[25,1], index: 1, kind: input, shape index: {}]
  %s2 = inlined_call_operand.vmem [shape: f32[25,1], index: 2, kind: input, shape index: {}]
  %s3 = inlined_call_operand.vmem [shape: f32[15,25], index: 3, kind: input, shape index: {}]
  %s4 = inlined_call_operand.vmem [shape: f32[15,1], index: 4, kind: input, shape index: {}]
  %s5 = inlined_call_operand.vmem [shape: f32[10,15], index: 5, kind: input, shape index: {}]
  %s6 = inlined_call_operand.vmem [shape: f32[10,1], index: 6, kind: input, shape index: {}]
  %s7 = inlined_call_operand.vmem [shape: f32[10,128], index: 7, kind: output, shape index: {}]
  %s8 = sld [smem:[#allocation0]]
  $region38: #{encoder2_forward.1} parent=0
    _
  %s10 = ssub.s32 1, %s8
  %s11 = scalar_select 0, %s10, %s8
  // Predicated region
  $region2: #{encoder2_forward.1} parent=0 // pred_check
    _
  $region3: #{encoder2_forward.1} parent=0 // pred_check_branch
    %13 = sbr.rel (0) target = $region5
  $region4: #{encoder2_forward.1} parent=0 // pred_region
    _
  $region5: #{encoder2_forward.1} parent=0 // pred_fallthru
    _
  // Predicated region
  $region6: #{encoder2_forward.1} parent=0 // pred_check
    _
  $region7: #{encoder2_forward.1} parent=0 // pred_check_branch
    %15 = sbr.rel (0) target = $region9
  $region8: #{encoder2_forward.1} parent=0 // pred_region
    _
  $region9: #{encoder2_forward.1} parent=0 // pred_fallthru
    _
  // Predicated region
  $region10: #{encoder2_forward.1} parent=0 // pred_check
    _
  $region11: #{encoder2_forward.1} parent=0 // pred_check_branch
    %17 = sbr.rel (0) target = $region13
  $region12: #{encoder2_forward.1} parent=0 // pred_region
    _
  $region13: #{encoder2_forward.1} parent=0 // pred_fallthru
    _
  // Predicated region
  $region14: #{encoder2_forward.1} parent=0 // pred_check
    _
  $region15: #{encoder2_forward.1} parent=0 // pred_check_branch
    %19 = sbr.rel (0) target = $region17
  $region16: #{encoder2_forward.1} parent=0 // pred_region
    _
  $region17: #{encoder2_forward.1} parent=0 // pred_fallthru
    _
  // Predicated region
  $region18: #{encoder2_forward.1} parent=0 // pred_check
    _
  $region19: #{encoder2_forward.1} parent=0 // pred_check_branch
    %21 = sbr.rel (0) target = $region21
  $region20: #{encoder2_forward.1} parent=0 // pred_region
    _
  $region21: #{encoder2_forward.1} parent=0 // pred_fallthru
    _
  // Predicated region
  $region22: #{encoder2_forward.1} parent=0 // pred_check
    _
  $region23: #{encoder2_forward.1} parent=0 // pred_check_branch
    %23 = sbr.rel (0) target = $region25
  $region24: #{encoder2_forward.1} parent=0 // pred_region
    _
  $region25: #{encoder2_forward.1} parent=0 // pred_fallthru
    _
  // Predicated region
  $region26: #{encoder2_forward.1} parent=0 // pred_check
    _
  $region27: #{encoder2_forward.1} parent=0 // pred_check_branch
    %25 = sbr.rel (0) target = $region29
  $region28: #{encoder2_forward.1} parent=0 // pred_region
    _
  $region29: #{encoder2_forward.1} parent=0 // pred_fallthru
    _
  %v26 = vld [vmem:[%s0] sm:$0x1]
  %v27 = vld [vmem:[%s1] sm:$0xff]
  %v28 = vld [vmem:[%s1 + $0x8] sm:$0xff]
  %v29 = vld [vmem:[%s1 + $0x10] sm:$0xff]
  %v30 = vld [vmem:[%s1 + $0x18] sm:$0x1]
  %32 = vset.pattern.permute.xlu0 0
  %33 = vperm.xlu0 %32, %v27
  %v34 = vpop.permute.xlu0 %33
  %37 = vset.pattern.permute.xlu0 0
  %38 = vperm.xlu0 %37, %v28
  %v39 = vpop.permute.xlu0 %38
  %42 = vset.pattern.permute.xlu0 0
  %43 = vperm.xlu0 %42, %v29
  %v44 = vpop.permute.xlu0 %43
  %47 = vset.pattern.permute.xlu0 0
  %48 = vperm.xlu0 %47, %v30
  %v49 = vpop.permute.xlu0 %48
  %v52 = vlaneseq
  %v53 = vshrl.u32 %v52, 7
  %v54 = vsub.s32 0, %v53
  %v55 = vrot.slane %v26, %v54
  %v57 = vmul.f32 %v34, %v55
  %v58 = vmul.f32 %v39, %v55
  %v59 = vmul.f32 %v44, %v55
  %v60 = vmul.f32 %v49, %v55
  %v61 = vld [vmem:[%s2] sm:$0xff]
  %v62 = vld [vmem:[%s2 + $0x8] sm:$0xff]
  %v63 = vld [vmem:[%s2 + $0x10] sm:$0xff]
  %v64 = vld [vmem:[%s2 + $0x18] sm:$0x1]
  %66 = vset.pattern.permute.xlu0 0
  %67 = vperm.xlu0 %66, %v61
  %v68 = vpop.permute.xlu0 %67
  %71 = vset.pattern.permute.xlu0 0
  %72 = vperm.xlu0 %71, %v62
  %v73 = vpop.permute.xlu0 %72
  %76 = vset.pattern.permute.xlu0 0
  %77 = vperm.xlu0 %76, %v63
  %v78 = vpop.permute.xlu0 %77
  %81 = vset.pattern.permute.xlu0 0
  %82 = vperm.xlu0 %81, %v64
  %v83 = vpop.permute.xlu0 %82
  %v85 = vadd.f32 %v57, %v68
  %v86 = vadd.f32 %v58, %v73
  %v87 = vadd.f32 %v59, %v78
  %v88 = vadd.f32 %v60, %v83
  %v89 = vsub.f32 0.0, %v85
  %v90 = vsub.f32 0.0, %v86
  %v91 = vsub.f32 0.0, %v87
  %v92 = vsub.f32 0.0, %v88
  %v93 = vmul.f32 %v89, 1.442695
  %v94 = vpow.pop %v93
  %v95 = vmul.f32 %v90, 1.442695
  %v96 = vpow.pop %v95
  %v97 = vmul.f32 %v91, 1.442695
  %v98 = vpow.pop %v97
  %v99 = vmul.f32 %v92, 1.442695
  %v100 = vpow.pop %v99
  %v101 = vadd.f32 %v94, 1.0
  %v102 = vadd.f32 %v96, 1.0
  %v103 = vadd.f32 %v98, 1.0
  %v104 = vadd.f32 %v100, 1.0
  %v105 = vrcp.pop %v101
  %v106 = vrcp.pop %v102
  %v107 = vrcp.pop %v103
  %v108 = vrcp.pop %v104
  %v109 = vld [vmem:[%s3] sm:$0xff]
  %v110 = vld [vmem:[%s3 + $0x8] sm:$0x7f]
  %v111 = vld [vmem:[%s4] sm:$0xff]
  %v112 = vld [vmem:[%s4 + $0x8] sm:$0x7f]
  %114 = vset.pattern.permute.xlu0 0
  %115 = vperm.xlu0 %114, %v111
  %v116 = vpop.permute.xlu0 %115
  %119 = vset.pattern.permute.xlu0 0
  %120 = vperm.xlu0 %119, %v112
  %v121 = vpop.permute.xlu0 %120
  %vm123 = vcmask 203776
  %v125 = vsel %vm123, %v109, 0
  %v128 = vsel %vm123, %v110, 0
  %vm130 = vcmask 1040384
  %v132 = vsel %vm130, %v108, 0
  %134 = vmatprep.subr.mxu0 0.0
  %135 = vmatpush1.msra.mxu0 0.0
  %136 = vmatprep.subr.mxu0 0.0
  %137 = vmatpush1.msra.mxu0 0.0
  %138 = vmatprep.subr.mxu0 0.0
  %139 = vmatpush1.msra.mxu0 0.0
  %140 = vmatprep.subr.mxu0 0.0
  %141 = vmatpush1.msra.mxu0 0.0
  %142 = vmatprep.subr.mxu0 0.0
  %143 = vmatpush1.msra.mxu0 0.0
  %144 = vmatprep.subr.mxu0 0.0
  %145 = vmatpush1.msra.mxu0 0.0
  %146 = vmatprep.subr.mxu0 0.0
  %147 = vmatpush1.msra.mxu0 0.0
  %148 = vmatprep.subr.mxu0 0.0
  %149 = vmatpush1.msra.mxu0 0.0
  %150 = vmatprep.subr.mxu0 0.0
  %151 = vmatpush1.msra.mxu0 0.0
  %152 = vmatprep.subr.mxu0 0.0
  %153 = vmatpush1.msra.mxu0 0.0
  %154 = vmatprep.subr.mxu0 0.0
  %155 = vmatpush1.msra.mxu0 0.0
  %156 = vmatprep.subr.mxu0 0.0
  %157 = vmatpush1.msra.mxu0 0.0
  %158 = vmatprep.subr.mxu0 0.0
  %159 = vmatpush1.msra.mxu0 %v132
  %160 = vmatprep.subr.mxu0 0.0
  %161 = vmatpush1.msra.mxu0 %v107
  %162 = vmatprep.subr.mxu0 0.0
  %163 = vmatpush1.msra.mxu0 %v106
  %164 = vmatprep.subr.mxu0 0.0
  %165 = vmatpush1.msra.mxu0 %v105
  %166 = vmatprep.subr.mxu0 0.0
  %167 = vmatpush2.msra.mxu0 0.0
  %168 = vmatprep.subr.mxu0 0.0
  %169 = vmatpush2.msra.mxu0 0.0
  %170 = vmatprep.subr.mxu0 0.0
  %171 = vmatpush2.msra.mxu0 0.0
  %172 = vmatprep.subr.mxu0 0.0
  %173 = vmatpush2.msra.mxu0 0.0
  %174 = vmatprep.subr.mxu0 0.0
  %175 = vmatpush2.msra.mxu0 0.0
  %176 = vmatprep.subr.mxu0 0.0
  %177 = vmatpush2.msra.mxu0 0.0
  %178 = vmatprep.subr.mxu0 0.0
  %179 = vmatpush2.msra.mxu0 0.0
  %180 = vmatprep.subr.mxu0 0.0
  %181 = vmatpush2.msra.mxu0 0.0
  %182 = vmatprep.subr.mxu0 0.0
  %183 = vmatpush2.msra.mxu0 0.0
  %184 = vmatprep.subr.mxu0 0.0
  %185 = vmatpush2.msra.mxu0 0.0
  %186 = vmatprep.subr.mxu0 0.0
  %187 = vmatpush2.msra.mxu0 0.0
  %188 = vmatprep.subr.mxu0 0.0
  %189 = vmatpush2.msra.mxu0 0.0
  %190 = vmatprep.subr.mxu0 0.0
  %191 = vmatpush2.msra.mxu0 0.0
  %192 = vmatprep.subr.mxu0 0.0
  %193 = vmatpush2.msra.mxu0 0.0
  %194 = vmatprep.subr.mxu0 0.0
  %195 = vmatpush2.msra.mxu0 0.0
  %196 = vmatprep.subr.mxu0 0.0
  %197 = vmatpush2.msra.mxu0 0.0
  %198 = vmatprep.mubr.f32.mxu0 0.0
  %199 = vmatmul.mubr.f32.gmra.mxu0 %v125
  %v200 = vpop.f32.mrf.mxu0
  %v201 = vadd.f32 %v116, %v200
  %v202 = vpop.f32.mrf.mxu0
  %203 = vmatprep.mubr.f32.mxu0 0.0
  %204 = vmatmul.mubr.f32.gmra.mxu0 %v128
  %v205 = vpop.f32.mrf.mxu0
  %v206 = vadd.f32 %v121, %v205
  %v207 = vpop.f32.mrf.mxu0
  %208 = vdwg.mxu0
  %v209 = vsub.f32 0.0, %v201
  %v210 = vsub.f32 0.0, %v206
  %v211 = vmul.f32 %v209, 1.442695
  %v212 = vpow.pop %v211
  %v213 = vmul.f32 %v210, 1.442695
  %v214 = vpow.pop %v213
  %v215 = vadd.f32 %v212, 1.0
  %v216 = vadd.f32 %v214, 1.0
  %v217 = vrcp.pop %v215
  %v218 = vrcp.pop %v216
  %v219 = vld [vmem:[%s5] sm:$0xff]
  %v220 = vld [vmem:[%s5 + $0x8] sm:$0x3]
  %v221 = vld [vmem:[%s6] sm:$0xff]
  %v222 = vld [vmem:[%s6 + $0x8] sm:$0x3]
  %224 = vset.pattern.permute.xlu0 0
  %225 = vperm.xlu0 %224, %v221
  %v226 = vpop.permute.xlu0 %225
  %229 = vset.pattern.permute.xlu0 0
  %230 = vperm.xlu0 %229, %v222
  %v231 = vpop.permute.xlu0 %230
  %vm233 = vcmask 121856
  %v235 = vsel %vm233, %v219, 0
  %v238 = vsel %vm233, %v220, 0
  %vm240 = vcmask 1046528
  %v242 = vsel %vm240, %v218, 0
  %244 = vmatprep.subr.mxu0 0.0
  %245 = vmatpush1.msra.mxu0 0.0
  %246 = vmatprep.subr.mxu0 0.0
  %247 = vmatpush1.msra.mxu0 0.0
  %248 = vmatprep.subr.mxu0 0.0
  %249 = vmatpush1.msra.mxu0 0.0
  %250 = vmatprep.subr.mxu0 0.0
  %251 = vmatpush1.msra.mxu0 0.0
  %252 = vmatprep.subr.mxu0 0.0
  %253 = vmatpush1.msra.mxu0 0.0
  %254 = vmatprep.subr.mxu0 0.0
  %255 = vmatpush1.msra.mxu0 0.0
  %256 = vmatprep.subr.mxu0 0.0
  %257 = vmatpush1.msra.mxu0 0.0
  %258 = vmatprep.subr.mxu0 0.0
  %259 = vmatpush1.msra.mxu0 0.0
  %260 = vmatprep.subr.mxu0 0.0
  %261 = vmatpush1.msra.mxu0 0.0
  %262 = vmatprep.subr.mxu0 0.0
  %263 = vmatpush1.msra.mxu0 0.0
  %264 = vmatprep.subr.mxu0 0.0
  %265 = vmatpush1.msra.mxu0 0.0
  %266 = vmatprep.subr.mxu0 0.0
  %267 = vmatpush1.msra.mxu0 0.0
  %268 = vmatprep.subr.mxu0 0.0
  %269 = vmatpush1.msra.mxu0 0.0
  %270 = vmatprep.subr.mxu0 0.0
  %271 = vmatpush1.msra.mxu0 0.0
  %272 = vmatprep.subr.mxu0 0.0
  %273 = vmatpush1.msra.mxu0 %v242
  %274 = vmatprep.subr.mxu0 0.0
  %275 = vmatpush1.msra.mxu0 %v217
  %276 = vmatprep.subr.mxu0 0.0
  %277 = vmatpush2.msra.mxu0 0.0
  %278 = vmatprep.subr.mxu0 0.0
  %279 = vmatpush2.msra.mxu0 0.0
  %280 = vmatprep.subr.mxu0 0.0
  %281 = vmatpush2.msra.mxu0 0.0
  %282 = vmatprep.subr.mxu0 0.0
  %283 = vmatpush2.msra.mxu0 0.0
  %284 = vmatprep.subr.mxu0 0.0
  %285 = vmatpush2.msra.mxu0 0.0
  %286 = vmatprep.subr.mxu0 0.0
  %287 = vmatpush2.msra.mxu0 0.0
  %288 = vmatprep.subr.mxu0 0.0
  %289 = vmatpush2.msra.mxu0 0.0
  %290 = vmatprep.subr.mxu0 0.0
  %291 = vmatpush2.msra.mxu0 0.0
  %292 = vmatprep.subr.mxu0 0.0
  %293 = vmatpush2.msra.mxu0 0.0
  %294 = vmatprep.subr.mxu0 0.0
  %295 = vmatpush2.msra.mxu0 0.0
  %296 = vmatprep.subr.mxu0 0.0
  %297 = vmatpush2.msra.mxu0 0.0
  %298 = vmatprep.subr.mxu0 0.0
  %299 = vmatpush2.msra.mxu0 0.0
  %300 = vmatprep.subr.mxu0 0.0
  %301 = vmatpush2.msra.mxu0 0.0
  %302 = vmatprep.subr.mxu0 0.0
  %303 = vmatpush2.msra.mxu0 0.0
  %304 = vmatprep.subr.mxu0 0.0
  %305 = vmatpush2.msra.mxu0 0.0
  %306 = vmatprep.subr.mxu0 0.0
  %307 = vmatpush2.msra.mxu0 0.0
  %308 = vmatprep.mubr.f32.mxu0 0.0
  %309 = vmatmul.mubr.f32.gmra.mxu0 %v235
  %v310 = vpop.f32.mrf.mxu0
  %v311 = vadd.f32 %v226, %v310
  %v312 = vpop.f32.mrf.mxu0
  %313 = vmatprep.mubr.f32.mxu0 0.0
  %314 = vmatmul.mubr.f32.gmra.mxu0 %v238
  %v315 = vpop.f32.mrf.mxu0
  %v316 = vadd.f32 %v231, %v315
  %v317 = vpop.f32.mrf.mxu0
  %318 = vdwg.mxu0
  %v319 = vsub.f32 0.0, %v311
  %v320 = vsub.f32 0.0, %v316
  %v321 = vmul.f32 %v319, 1.442695
  %v322 = vpow.pop %v321
  %v323 = vmul.f32 %v320, 1.442695
  %v324 = vpow.pop %v323
  %v325 = vadd.f32 %v322, 1.0
  %v326 = vadd.f32 %v324, 1.0
  %v327 = vrcp.pop %v325
  %v328 = vrcp.pop %v326
  %329 = vst [vmem:[%s7] sm:$0xff] %v327
  %330 = vst [vmem:[%s7 + $0x8] sm:$0x3] %v328
  // Predicated region
  $region30: #{encoder2_forward.1} parent=0 // pred_check
    _
  $region31: #{encoder2_forward.1} parent=0 // pred_check_branch
    %332 = sbr.rel (0) target = $region33
  $region32: #{encoder2_forward.1} parent=0 // pred_region
    _
  $region33: #{encoder2_forward.1} parent=0 // pred_fallthru
    _
  // Predicated region
  $region34: #{encoder2_forward.1} parent=0 // pred_check
    _
  $region35: #{encoder2_forward.1} parent=0 // pred_check_branch
    %334 = sbr.rel (0) target = $region37
  $region36: #{encoder2_forward.1} parent=0 // pred_region
    _
  $region37: #{encoder2_forward.1} parent=0 // pred_fallthru
    _

</llo_original>
